<compile_context>
chip_gen: v7x
topology: tpu7x:2x2x1
jax: 0.10.0
libtpu: 0.0.40
codegen_flags: <defaults>
</compile_context>

<pallas_src>
import functools

import jax
import jax.numpy as jnp
import numpy as np
from jax.experimental import pallas as pl
from jax.experimental.pallas import tpu as pltpu

VMEM_SPEC = pl.BlockSpec(memory_space=pltpu.MemorySpace.VMEM)
HIGHEST = jax.lax.Precision.HIGHEST


# ------------------------------------------------------------------ tiling helpers
def _pick_spatial_tile(hw_pad, frames, cin, target_bytes=512 * 1024, max_tile=65536):
    """Largest multiple-of-128 divisor of hw_pad whose per-grid-step input block
    (frames * cin * tile_s * 4 B) is ~target_bytes.  This amortizes the ~0.35 us/step grid
    overhead while keeping the double-buffered input block ~1 MiB — comfortably inside VMEM on
    every generation (v7x has only 64 MiB).
    TODO(synk): make target_bytes generation-specific (v7x wants ~1 MiB/step, v5e ~0.3 MiB)."""
    per_lane = frames * cin * 4
    tgt = min(hw_pad, max_tile, max(128, target_bytes // per_lane))
    tgt -= tgt % 128
    tgt = max(tgt, 128)
    for cand in range(tgt, 127, -128):
        if hw_pad % cand == 0:
            return cand
    return hw_pad  # unreachable: hw_pad is a multiple of 128


def _pick_inner(tile_s, target=256):
    """Inner-chunk width (multiple of 128 dividing tile_s): bounds the (cfeat, frames, inner_s)
    conv intermediate to a few vregs so nothing spills while tile_s grows."""
    tgt = min(tile_s, target)
    tgt -= tgt % 128
    tgt = max(tgt, 128)
    for cand in range(tgt, 127, -128):
        if tile_s % cand == 0:
            return cand
    return 128


# ------------------------------------------------------------------ fused backbone kernel
def _fused_backbone_kernel(x_ref, wc_ref, bc_ref, wcls_ref, bcls_ref,
                           logits_ref, acc_ref, *, inv_total, inner_s, n_pad):
    """One grid step for (sample b, pixel-tile k): 1x1-conv (MXU for cin>=2, VPU outer product
    for cin==1) + bias + ReLU over all frames of the tile, reduced on the fly to a (cfeat, 128)
    lane-partial that is accumulated in VMEM scratch.  On the last tile: finish the global
    average pool (frames x pixels) and apply the linear classifier."""
    k = pl.program_id(1)                       # pixel-tile index (reduction axis)
    frames, cin, tile_s = x_ref.shape
    cfeat = wc_ref.shape[0]
    n_inner = tile_s // inner_s
    groups = inner_s // 128

    @pl.when(k == 0)
    def _():
        acc_ref[...] = jnp.zeros_like(acc_ref)

    wc = wc_ref[...]                                              # (cfeat, cin), resident
    # Hoisted broadcasts: JAX does not CSE broadcast_in_dim, so materialize them once per grid
    # step instead of once per inner iteration / frame.
    bcb = jnp.broadcast_to(bc_ref[...], (cfeat, inner_s))         # bias, lane-splat
    wcb = jnp.broadcast_to(wc[:, 0:1], (cfeat, inner_s)) if cin == 1 else None

    def body(i, carry):
        s0 = pl.multiple_of(i * inner_s, inner_s)
        xc = x_ref[:, :, pl.ds(s0, inner_s)]                      # (frames, cin, inner_s)
        fs = None
        for f in range(frames):                                   # static, tiny (1 or T)
            xf = xc[f]                                            # (cin, inner_s)
            if cin == 1:
                ff = wcb * xf                                     # VPU outer product (K=1)
            else:
                ff = jnp.dot(wc, xf,                              # MXU: M=cfeat K=cin N=inner_s
                             preferred_element_type=jnp.float32,
                             precision=HIGHEST)
            ff = jnp.maximum(ff + bcb, 0.0)                       # bias + ReLU
            fs = ff if fs is None else fs + ff                    # sum over frames
        # lane-partial reduction: (cfeat, inner_s) -> (cfeat, 128), pure vadds on whole vregs
        part = fs[:, 0:128]
        for g in range(1, groups):
            part = part + fs[:, g * 128:(g + 1) * 128]
        return carry + part

    zero = jnp.zeros((cfeat, 128), jnp.float32)
    part = jax.lax.fori_loop(0, n_inner, body, zero, unroll=min(4, n_inner))
    acc_ref[...] += part                       # single 16 KiB read-modify-write per grid step

    # Written only on the LAST tile; correct because the output index_map is constant over k,
    # which is the last grid axis and marked "arbitrary".  Keep that invariant.
    @pl.when(k == pl.num_programs(1) - 1)
    def _():
        total = jnp.sum(acc_ref[...], axis=-1, keepdims=True)     # (cfeat, 1)
        if n_pad:
            # zero-padded pixels contributed exactly relu(bias) each; remove them.
            total = total - (frames * n_pad) * jnp.maximum(bc_ref[...], 0.0)
        pooled = total * inv_total                                 # adaptive avg pool, (cfeat, 1)
        logits = jnp.sum(wcls_ref[...] * pooled, axis=0, keepdims=True) + bcls_ref[...]
        logits_ref[0] = logits                                     # (1, num_classes)


def fused_backbone_classify(x, w_conv, b_conv, w_cls, b_cls, *, batch, frames):
    """x: (batch*frames, Cin, H*W) f32  ->  logits (batch, num_classes).

    Fuses 1x1-conv + ReLU + adaptive average pool over (frames, pixels) + Linear in a single
    gridded pallas_call.  Grid = (batch, pixel_tiles); frames are folded into the input block,
    batch is "parallel" (megacore on v7x), the pixel-tile axis is the reduction axis with a
    (cfeat, 128) resident VMEM accumulator."""
    n, cin, hw = x.shape
    assert n == batch * frames
    cfeat = w_conv.shape[0]
    nc = w_cls.shape[1]

    # Pad the pixel axis to a multiple of 128 (lane width); padded pixels are corrected for
    # exactly inside the kernel, so awkward spatial sizes never fall back to huge blocks.
    hw_pad = ((hw + 127) // 128) * 128
    n_pad = hw_pad - hw
    if n_pad:
        x = jnp.pad(x, ((0, 0), (0, 0), (0, n_pad)))

    tile_s = _pick_spatial_tile(hw_pad, frames, cin)
    n_tiles = hw_pad // tile_s
    inner_s = _pick_inner(tile_s)

    kernel = functools.partial(_fused_backbone_kernel,
                               inv_total=1.0 / float(frames * hw),
                               inner_s=inner_s, n_pad=n_pad)

    out = pl.pallas_call(
        kernel,
        out_shape=jax.ShapeDtypeStruct((batch, 1, nc), jnp.float32),
        grid_spec=pltpu.PrefetchScalarGridSpec(
            num_scalar_prefetch=0,
            grid=(batch, n_tiles),
            in_specs=[
                # all T frames of sample b, pixel tile k: rows b*frames .. (b+1)*frames-1
                # (pure NCHW reshape upstream; the view/permute + adaptive_avg_pool3d of the
                # reference are absorbed by this block layout and the pooling accumulator)
                pl.BlockSpec((frames, cin, tile_s), lambda b, k: (b, 0, k)),
                pl.BlockSpec((cfeat, cin), lambda b, k: (0, 0)),   # conv weight (resident)
                pl.BlockSpec((cfeat, 1), lambda b, k: (0, 0)),     # conv bias
                pl.BlockSpec((cfeat, nc), lambda b, k: (0, 0)),    # classifier weight
                pl.BlockSpec((1, nc), lambda b, k: (0, 0)),        # classifier bias
            ],
            out_specs=pl.BlockSpec((1, 1, nc), lambda b, k: (b, 0, 0)),
            scratch_shapes=[pltpu.VMEM((cfeat, 128), jnp.float32)],
        ),
        compiler_params=pltpu.CompilerParams(
            # batch "parallel" (2 TCs on v7x; ensure batch>=2 there), pixel tiles "arbitrary"
            dimension_semantics=("parallel", "arbitrary"),
            # blocks are ~0.5 MiB double-buffered, far below this on every generation
            vmem_limit_bytes=32 * 1024 * 1024,
        ),
    )(x, w_conv, b_conv, w_cls, b_cls)
    return out.reshape(batch, nc)


# ------------------------------------------------------------------ QMF fusion + losses
def _qmf_fusion_loss_kernel(l1_ref, l2_ref, y_ref, df_ref, avg_ref, loss_ref):
    l1 = l1_ref[...]                 # (B, C)
    l2 = l2_ref[...]                 # (B, C)
    y = y_ref[...]                   # (B, C) one-hot labels
    bsz = jnp.float32(l1.shape[0])

    def lse(l):                      # row-wise logsumexp, (B, 1)
        m = jnp.max(l, axis=-1, keepdims=True)
        return m + jnp.log(jnp.sum(jnp.exp(l - m), axis=-1, keepdims=True))

    # QMF.df: energy-based confidence = logsumexp(logits)/10 per modality,
    # logits_df = sum_n conf_n * logits_n
    conf1 = lse(l1) / 10.0
    conf2 = lse(l2) / 10.0
    logits_df = conf1 * l1 + conf2 * l2

    def cross_entropy(l):            # mean-reduced CE vs one-hot labels, (1, 1)
        nll = lse(l) - jnp.sum(y * l, axis=-1, keepdims=True)   # (B, 1)
        return jnp.sum(nll, axis=0, keepdims=True) / bsz        # (1, 1)

    # TODO(synk): qmf.reg_loss / qmf.history[n].correctness_update need persistent per-sample
    # training-history state (correctness EMA); omitted here, i.e. loss_reg = 0.
    loss = cross_entropy(logits_df) + cross_entropy(l1) + cross_entropy(l2)

    df_ref[...] = logits_df
    avg_ref[...] = 0.5 * (l1 + l2)
    loss_ref[...] = loss


def qmf_fusion_loss(l1, l2, y_onehot):
    bsz, nc = l1.shape
    return pl.pallas_call(
        _qmf_fusion_loss_kernel,
        out_shape=(
            jax.ShapeDtypeStruct((bsz, nc), jnp.float32),   # logits_df
            jax.ShapeDtypeStruct((bsz, nc), jnp.float32),   # avg_logits
            jax.ShapeDtypeStruct((1, 1), jnp.float32),      # loss
        ),
        in_specs=[VMEM_SPEC, VMEM_SPEC, VMEM_SPEC],
        out_specs=(VMEM_SPEC,) * 3,
    )(l1, l2, y_onehot)


# ------------------------------------------------------------------ model glue
class FusionNetPallas:
    def __init__(self, num_classes=6, cfeat=32, seed=0):
        self.num_classes = num_classes
        self.cfeat = cfeat
        ks = jax.random.split(jax.random.PRNGKey(seed), 8)
        # backbone stand-ins (1x1 conv + ReLU): weights (Cfeat, Cin), bias (Cfeat, 1)
        self.w_conv_a = 0.1 * jax.random.normal(ks[0], (cfeat, 1), jnp.float32)
        self.b_conv_a = 0.1 * jax.random.normal(ks[1], (cfeat, 1), jnp.float32)
        self.w_conv_v = 0.1 * jax.random.normal(ks[2], (cfeat, 3), jnp.float32)
        self.b_conv_v = 0.1 * jax.random.normal(ks[3], (cfeat, 1), jnp.float32)
        # nn.Linear(cfeat, num_classes) per modality; stored pre-transposed (in, out)
        # TODO(synk): cast inputs/weights to bf16 on v6e/v7x to halve HBM bytes (keep f32
        # accumulators/pool/logits); kept f32 here so the path also runs on v5e (no bf16 VPU)
        # and matches the f32 reference tightly.
        self.w1_t = 0.1 * jax.random.normal(ks[4], (cfeat, num_classes), jnp.float32)
        self.b1 = 0.1 * jax.random.normal(ks[5], (1, num_classes), jnp.float32)
        self.w2_t = 0.1 * jax.random.normal(ks[6], (cfeat, num_classes), jnp.float32)
        self.b2 = 0.1 * jax.random.normal(ks[7], (1, num_classes), jnp.float32)

    def forward(self, x1_data, x2_data, label, idx):
        del idx  # TODO(synk): only used for stateful QMF history bookkeeping (omitted)
        b = x1_data.shape[0]

        # audio: (B, 1, H, W) -> (B, 1, H*W): pure reshape, no transpose / channel pad
        x1 = x1_data.reshape(b, x1_data.shape[1], -1)
        x1_logits = fused_backbone_classify(
            x1, self.w_conv_a, self.b_conv_a, self.w1_t, self.b1, batch=b, frames=1)

        # visual: (B*T, 3, H, W) -> (B*T, 3, H*W): pure reshape; frames for sample b are the
        # contiguous rows b*T..(b+1)*T-1 and are folded into the kernel's input block.
        n2 = x2_data.shape[0]
        t = n2 // b
        x2 = x2_data.reshape(n2, x2_data.shape[1], -1)
        x2_logits = fused_backbone_classify(
            x2, self.w_conv_v, self.b_conv_v, self.w2_t, self.b2, batch=b, frames=t)

        y_onehot = jax.nn.one_hot(label, self.num_classes, dtype=jnp.float32)
        logits_df, avg_logits, loss = qmf_fusion_loss(x1_logits, x2_logits, y_onehot)
        return x1_logits, x2_logits, avg_logits, loss[0, 0], logits_df


# ------------------------------------------------------------------ pure-JAX reference
def reference_forward(net, x1_data, x2_data, label):
    b = x1_data.shape[0]

    def backbone_logits(x_nchw, wc, bc, wcls, bcls, frames):
        n, cin, h, w = x_nchw.shape
        xr = x_nchw.reshape(n, cin, h * w)
        feat = jnp.maximum(
            jnp.einsum('ci,nis->ncs', wc, xr, precision=HIGHEST) + bc[None], 0.0)
        feat = feat.reshape(b, frames, net.cfeat, h * w)
        pooled = feat.mean(axis=(1, 3))                         # adaptive avg pool -> (B, Cfeat)
        return jnp.dot(pooled, wcls, precision=HIGHEST) + bcls

    x1_logits = backbone_logits(x1_data, net.w_conv_a, net.b_conv_a, net.w1_t, net.b1, 1)
    t = x2_data.shape[0] // b
    x2_logits = backbone_logits(x2_data, net.w_conv_v, net.b_conv_v, net.w2_t, net.b2, t)

    y = jax.nn.one_hot(label, net.num_classes, dtype=jnp.float32)

    def lse(l):
        return jax.scipy.special.logsumexp(l, axis=-1, keepdims=True)

    c1, c2 = lse(x1_logits) / 10.0, lse(x2_logits) / 10.0
    logits_df = c1 * x1_logits + c2 * x2_logits

    def ce(l):
        return jnp.mean(lse(l)[:, 0] - jnp.sum(y * l, axis=-1))

    loss = ce(logits_df) + ce(x1_logits) + ce(x2_logits)
    avg = 0.5 * (x1_logits + x2_logits)
    return x1_logits, x2_logits, avg, loss, logits_df


# ------------------------------------------------------------------ main
if __name__ == "__main__":
    B, T, H, W = 2, 4, 16, 16
    NUM_CLASSES = 6
    key = jax.random.PRNGKey(0)
    k1, k2, k3 = jax.random.split(key, 3)
    x1 = jax.random.normal(k1, (B, 1, H, W), jnp.float32)          # audio spectrogram (NCHW)
    x2 = jax.random.normal(k2, (B * T, 3, H, W), jnp.float32)      # visual frames (NCHW)
    label = jax.random.randint(k3, (B,), 0, NUM_CLASSES)
    idx = jnp.arange(B, dtype=jnp.int32)

    net = FusionNetPallas(num_classes=NUM_CLASSES, cfeat=32, seed=0)
    outs = net.forward(x1, x2, label, idx)
    outs = jax.block_until_ready(outs)

    refs = reference_forward(net, x1, x2, label)
    for o, r in zip(outs, refs):
        np.testing.assert_allclose(np.asarray(o), np.asarray(r), rtol=1e-4, atol=1e-4)

    print("KERNEL_OK")
</pallas_src>

<mosaic_0001>
module attributes {stable_mosaic.version = 11 : i64} {
  func.func @_fused_backbone_kernel(%arg0: i32, %arg1: i32, %arg2: memref<1x1x256xf32, #tpu.memory_space<vmem>>, %arg3: memref<32x1xf32, #tpu.memory_space<vmem>>, %arg4: memref<32x1xf32, #tpu.memory_space<vmem>>, %arg5: memref<32x6xf32, #tpu.memory_space<vmem>>, %arg6: memref<1x6xf32, #tpu.memory_space<vmem>>, %arg7: memref<1x1x6xf32, #tpu.memory_space<vmem>>, %arg8: memref<32x128xf32, #tpu.memory_space<vmem>>) attributes {dimension_semantics = [#tpu.dimension_semantics<parallel>, #tpu.dimension_semantics<arbitrary>], iteration_bounds = array<i64: 2, 1>, scalar_prefetch = 0 : i64, scratch_operands = 1 : i64, tpu.core_type = #tpu.core_type<tc>, window_params = [{transform_indices = @transform_0, window_bounds = array<i64: 1, 1, 256>}, {pipeline_mode = #tpu.pipeline_mode<synchronous>, transform_indices = @transform_1, window_bounds = array<i64: 32, 1>}, {pipeline_mode = #tpu.pipeline_mode<synchronous>, transform_indices = @transform_2, window_bounds = array<i64: 32, 1>}, {pipeline_mode = #tpu.pipeline_mode<synchronous>, transform_indices = @transform_3, window_bounds = array<i64: 32, 6>}, {pipeline_mode = #tpu.pipeline_mode<synchronous>, transform_indices = @transform_4, window_bounds = array<i64: 1, 6>}, {transform_indices = @transform_5, window_bounds = array<i64: 1, 1, 6>}]} {
    %c0_i32 = arith.constant 0 : i32
    %0 = arith.cmpi eq, %arg1, %c0_i32 : i32
    %1 = arith.extui %0 : i1 to i32
    %c0_i32_0 = arith.constant 0 : i32
    %2 = arith.cmpi ne, %1, %c0_i32_0 : i32
    scf.if %2 {
      %cst_14 = arith.constant 0.000000e+00 : f32
      %30 = vector.broadcast %cst_14 : f32 to vector<32x128xf32>
      %c0_15 = arith.constant 0 : index
      %c0_16 = arith.constant 0 : index
      %31 = vector.load %arg8[%c0_15, %c0_16] : memref<32x128xf32, #tpu.memory_space<vmem>>, vector<32x128xf32>
      tpu.vector_store %arg8[%c0_15, %c0_16], %30 {strides = array<i32>} : memref<32x128xf32, #tpu.memory_space<vmem>>, vector<32x128xf32>,
    } else {
    }
    %c0 = arith.constant 0 : index
    %c0_1 = arith.constant 0 : index
    %3 = vector.load %arg3[%c0, %c0_1] : memref<32x1xf32, #tpu.memory_space<vmem>>, vector<32x1xf32>
    %c0_2 = arith.constant 0 : index
    %c0_3 = arith.constant 0 : index
    %4 = vector.load %arg4[%c0_2, %c0_3] : memref<32x1xf32, #tpu.memory_space<vmem>>, vector<32x1xf32>
    %5 = vector.shape_cast %4 : vector<32x1xf32> to vector<32x1xf32>
    %6 = vector.broadcast %5 : vector<32x1xf32> to vector<32x256xf32>
    %7 = vector.shape_cast %3 : vector<32x1xf32> to vector<32x1xf32>
    %8 = vector.broadcast %7 : vector<32x1xf32> to vector<32x256xf32>
    %cst = arith.constant 0.000000e+00 : f32
    %9 = vector.broadcast %cst : f32 to vector<32x128xf32>
    %c0_i32_4 = arith.constant 0 : i32
    %c256_i32 = arith.constant 256 : i32
    %10 = arith.muli %c0_i32_4, %c256_i32 : i32
    %11 = tpu.assume_multiple %10, 256 : i32
    %c0_5 = arith.constant 0 : index
    %c0_6 = arith.constant 0 : index
    %12 = arith.index_cast %11 : i32 to index
    %13 = vector.load %arg2[%c0_5, %c0_6, %12] : memref<1x1x256xf32, #tpu.memory_space<vmem>>, vector<1x1x256xf32>
    %14 = vector.shape_cast %13 : vector<1x1x256xf32> to vector<1x256xf32>
    %15 = vector.broadcast %14 : vector<1x256xf32> to vector<32x256xf32>
    %16 = arith.mulf %8, %15 : vector<32x256xf32>
    %17 = arith.addf %16, %6 : vector<32x256xf32>
    %cst_7 = arith.constant 0.000000e+00 : f32
    %18 = vector.broadcast %cst_7 : f32 to vector<32x256xf32>
    %19 = arith.maximumf %17, %18 : vector<32x256xf32>
    %20 = vector.extract_strided_slice %19 {offsets = [0, 0], sizes = [32, 128], strides = [1, 1]} : vector<32x256xf32> to vector<32x128xf32>
    %21 = vector.extract_strided_slice %19 {offsets = [0, 128], sizes = [32, 128], strides = [1, 1]} : vector<32x256xf32> to vector<32x128xf32>
    %22 = arith.addf %20, %21 : vector<32x128xf32>
    %23 = arith.addf %9, %22 : vector<32x128xf32>
    %c1_i32 = arith.constant 1 : i32
    %c0_8 = arith.constant 0 : index
    %c0_9 = arith.constant 0 : index
    %24 = vector.load %arg8[%c0_8, %c0_9] : memref<32x128xf32, #tpu.memory_space<vmem>>, vector<32x128xf32>
    %25 = arith.addf %24, %23 : vector<32x128xf32>
    %c0_10 = arith.constant 0 : index
    %c0_11 = arith.constant 0 : index
    %26 = vector.load %arg8[%c0_10, %c0_11] : memref<32x128xf32, #tpu.memory_space<vmem>>, vector<32x128xf32>
    tpu.vector_store %arg8[%c0_10, %c0_11], %25 {strides = array<i32>} : memref<32x128xf32, #tpu.memory_space<vmem>>, vector<32x128xf32>,
    %c0_i32_12 = arith.constant 0 : i32
    %27 = arith.cmpi eq, %arg1, %c0_i32_12 : i32
    %28 = arith.extui %27 : i1 to i32
    %c0_i32_13 = arith.constant 0 : i32
    %29 = arith.cmpi ne, %28, %c0_i32_13 : i32
    scf.if %29 {
      %c0_14 = arith.constant 0 : index
      %c0_15 = arith.constant 0 : index
      %30 = vector.load %arg8[%c0_14, %c0_15] : memref<32x128xf32, #tpu.memory_space<vmem>>, vector<32x128xf32>
      %cst_16 = arith.constant dense<0.000000e+00> : vector<32xf32>
      %31 = vector.multi_reduction <add>, %30, %cst_16 [1] : vector<32x128xf32> to vector<32xf32>
      %32 = vector.shape_cast %31 : vector<32xf32> to vector<32x1xf32>
      %cst_17 = arith.constant 3.906250e-03 : f32
      %33 = vector.broadcast %cst_17 : f32 to vector<32x1xf32>
      %34 = arith.mulf %32, %33 : vector<32x1xf32>
      %c0_18 = arith.constant 0 : index
      %c0_19 = arith.constant 0 : index
      %35 = vector.load %arg5[%c0_18, %c0_19] : memref<32x6xf32, #tpu.memory_space<vmem>>, vector<32x6xf32>
      %36 = vector.broadcast %34 : vector<32x1xf32> to vector<32x6xf32>
      %37 = arith.mulf %35, %36 : vector<32x6xf32>
      %cst_20 = arith.constant dense<0.000000e+00> : vector<6xf32>
      %38 = vector.multi_reduction <add>, %37, %cst_20 [0] : vector<32x6xf32> to vector<6xf32>
      %39 = vector.shape_cast %38 : vector<6xf32> to vector<1x6xf32>
      %c0_21 = arith.constant 0 : index
      %c0_22 = arith.constant 0 : index
      %40 = vector.load %arg6[%c0_21, %c0_22] : memref<1x6xf32, #tpu.memory_space<vmem>>, vector<1x6xf32>
      %41 = arith.addf %39, %40 : vector<1x6xf32>
      %c0_23 = arith.constant 0 : index
      %c0_24 = arith.constant 0 : index
      %c0_25 = arith.constant 0 : index
      %42 = vector.load %arg7[%c0_23, %c0_24, %c0_25] : memref<1x1x6xf32, #tpu.memory_space<vmem>>, vector<1x1x6xf32>
      %43 = vector.shape_cast %42 : vector<1x1x6xf32> to vector<1x6xf32>
      %44 = vector.shape_cast %41 : vector<1x6xf32> to vector<1x1x6xf32>
      tpu.vector_store %arg7[%c0_23, %c0_24, %c0_25], %44 {strides = array<i32>} : memref<1x1x6xf32, #tpu.memory_space<vmem>>, vector<1x1x6xf32>,
    } else {
    }
    return
  }
  func.func @transform_0(%arg0: i32, %arg1: i32) -> (i32, i32, i32) {
    %c0_i32 = arith.constant 0 : i32
    %c0_i32_0 = arith.constant 0 : i32
    return %arg0, %c0_i32, %arg1 : i32, i32, i32
  }
  func.func @transform_1(%arg0: i32, %arg1: i32) -> (i32, i32) {
    %c0_i32 = arith.constant 0 : i32
    %c0_i32_0 = arith.constant 0 : i32
    %c0_i32_1 = arith.constant 0 : i32
    return %c0_i32, %c0_i32_0 : i32, i32
  }
  func.func @transform_2(%arg0: i32, %arg1: i32) -> (i32, i32) {
    %c0_i32 = arith.constant 0 : i32
    %c0_i32_0 = arith.constant 0 : i32
    %c0_i32_1 = arith.constant 0 : i32
    return %c0_i32, %c0_i32_0 : i32, i32
  }
  func.func @transform_3(%arg0: i32, %arg1: i32) -> (i32, i32) {
    %c0_i32 = arith.constant 0 : i32
    %c0_i32_0 = arith.constant 0 : i32
    %c0_i32_1 = arith.constant 0 : i32
    return %c0_i32, %c0_i32_0 : i32, i32
  }
  func.func @transform_4(%arg0: i32, %arg1: i32) -> (i32, i32) {
    %c0_i32 = arith.constant 0 : i32
    %c0_i32_0 = arith.constant 0 : i32
    %c0_i32_1 = arith.constant 0 : i32
    return %c0_i32, %c0_i32_0 : i32, i32
  }
  func.func @transform_5(%arg0: i32, %arg1: i32) -> (i32, i32, i32) {
    %c0_i32 = arith.constant 0 : i32
    %c0_i32_0 = arith.constant 0 : i32
    %c0_i32_1 = arith.constant 0 : i32
    return %arg0, %c0_i32, %c0_i32_0 : i32, i32, i32
  }
}

</mosaic_0001>

<llo_original>
// kernel: tpu_custom_call.1
$region0: #{tpu_custom_call.1}
  #allocation0 [shape = 'u32[]', space=smem, size = 0x4, offset = 0x4, fixed_abs, tag = 'smem constant byte address 0x4 - core index']
  #allocation1 [shape = 'u32[144,128]{1,0:T(1,128)}', space=vmem, size = 0x12000, scoped, tag = 'internal scratch']
  #allocation2 [shape = 'f32[32,128]{1,0:T(8,128)}', space=vmem, size = 0x4000, scoped, tag = 'scratch operand']
  %s0 = inlined_call_operand.vmem [shape: f32[2,1,256], index: 0, kind: input, shape index: {}]
  %s1 = inlined_call_operand.vmem [shape: f32[32,1], index: 1, kind: input, shape index: {}]
  %s2 = inlined_call_operand.vmem [shape: f32[32,1], index: 2, kind: input, shape index: {}]
  %s3 = inlined_call_operand.vmem [shape: f32[32,6], index: 3, kind: input, shape index: {}]
  %s4 = inlined_call_operand.vmem [shape: f32[1,6], index: 4, kind: input, shape index: {}]
  %s5 = inlined_call_operand.hbm [shape: f32[2,1,6], index: 5, kind: output, shape index: {}]
  %s6 = sld [smem:[#allocation0]]
  $region61: #{tpu_custom_call.1} parent=0
    _
  %s8 = ssub.s32 1, %s6
  %s9 = scalar_select 0, %s8, %s6
  $region1: #{tpu_custom_call.1} parent=0
    #allocation3 [shape = 'u8[1024]{0}', space=vmem, size = 0x400, scoped, tag = 'output window, operand 0']
    #allocation4 [shape = 's32[2]{0}', space=sflag, size = 0x8, scoped, tag = 'scoped memory for tpu_custom_call.1']
    %10 = vsyncpa [#allocation4], 0
    %s11 = scalar_lea.sflag [#allocation4], 1
    %12 = vsyncpa %s11, 0
    loop: start=0, step=1, limit=4
    $region2: #{tpu_custom_call.1} parent=1 // loop_pre_header
      _
    $region3: #{tpu_custom_call.1} parent=1 // loop_header
      %s14 = sphi 0, %s18
      %p15 = scmp.ge.s32.totalorder %s14, 4
      %s21 = sphi 0, %s33
      %s22 = sphi 0, %s29
      %s23 = sphi 0, %s21
      %s24 = sphi 0, %s22
      %s25 = sphi 0, %s23
      %s26 = sphi 0, %s24
      %s38 = sphi 0, %s40
      %s41 = sphi 0, %s38
      %s42 = sphi 0, %s41
      %s58 = sphi 0, %s42
      %s62 = sphi 0, %s62
      %s64 = sphi 0, %s62
      %s65 = sphi 0, %s64
      %s79 = sphi 0, %s65
      %s83 = sphi 0, %s83
      %s85 = sphi 0, %s83
      %s86 = sphi 0, %s85
      %s100 = sphi 0, %s86
      %s104 = sphi 0, %s104
      %s106 = sphi 0, %s104
      %s107 = sphi 0, %s106
      %s121 = sphi 0, %s107
      %s125 = sphi 0, %s125
      %s127 = sphi 0, %s125
      %s128 = sphi 0, %s127
      %s142 = sphi 0, %s128
      %s148 = sphi 0, %s150
      %s151 = sphi 0, %s148
      %s152 = sphi 0, %s151
      %s168 = sphi 0, %s152
    $region4: #{tpu_custom_call.1} parent=1 // loop_header_branch
      %17 = sbr.rel (%p15) target = $region8
    $region5: #{tpu_custom_call.1} parent=1 // loop_body
      %s19 = ssub.s32 %s14, 1
      %s20 = ssub.s32 %s14, 2
      %s27 = sadd.s32 1, %s22
      %p28 = scmp.ge.s32.totalorder %s27, 1
      %s29 = scalar_select %p28, 0, %s27
      %s30 = sadd.s32 1, %s21
      %s31 = scalar_select %p28, %s30, %s21
      %p32 = scmp.ge.s32.totalorder %s31, 2
      %s33 = scalar_select %p32, 0, %s31
      %s34 = ssub.s32 %s21, %s33
      %s35 = ssub.s32 %s22, %s29
      %s36 = sor.u32 %s34, %s35
      %p37 = scmp.eq.s32.totalorder %s36, 0
      %s39 = sadd.s32 %s38, 1
      %s40 = scalar_select %p37, %s38, %s39
      %p43 = pneg %p37
      %p44 = scmp.eq.s32.totalorder %s14, 1
      %p45 = por %p43, %p44
      %p46 = scmp.ne.s32.totalorder %s38, %s41
      %p47 = scmp.eq.s32.totalorder %s14, 0
      %p48 = por %p46, %p47
      %p49 = scmp.ne.s32.totalorder %s38, %s41
      %p50 = scmp.eq.s32.totalorder %s19, 1
      %p51 = por %p49, %p50
      %p52 = scmp.ne.s32.totalorder %s41, %s42
      %p53 = scmp.eq.s32.totalorder %s19, 0
      %p54 = por %p52, %p53
      %p55 = scmp.ne.s32.totalorder %s41, %s42
      %p56 = scmp.eq.s32.totalorder %s20, 1
      %p57 = por %p55, %p56
      %p59 = scmp.ne.s32.totalorder %s42, %s58
      %p60 = scmp.eq.s32.totalorder %s20, 0
      %p61 = por %p59, %p60
      %s63 = sadd.s32 %s62, 1
      %p66 = scmp.eq.s32.totalorder %s14, 1
      %p67 = scmp.ne.s32.totalorder %s62, %s64
      %p68 = scmp.eq.s32.totalorder %s14, 0
      %p69 = por %p67, %p68
      %p70 = scmp.ne.s32.totalorder %s62, %s64
      %p71 = scmp.eq.s32.totalorder %s19, 1
      %p72 = por %p70, %p71
      %p73 = scmp.ne.s32.totalorder %s64, %s65
      %p74 = scmp.eq.s32.totalorder %s19, 0
      %p75 = por %p73, %p74
      %p76 = scmp.ne.s32.totalorder %s64, %s65
      %p77 = scmp.eq.s32.totalorder %s20, 1
      %p78 = por %p76, %p77
      %p80 = scmp.ne.s32.totalorder %s65, %s79
      %p81 = scmp.eq.s32.totalorder %s20, 0
      %p82 = por %p80, %p81
      %s84 = sadd.s32 %s83, 1
      %p87 = scmp.eq.s32.totalorder %s14, 1
      %p88 = scmp.ne.s32.totalorder %s83, %s85
      %p89 = scmp.eq.s32.totalorder %s14, 0
      %p90 = por %p88, %p89
      %p91 = scmp.ne.s32.totalorder %s83, %s85
      %p92 = scmp.eq.s32.totalorder %s19, 1
      %p93 = por %p91, %p92
      %p94 = scmp.ne.s32.totalorder %s85, %s86
      %p95 = scmp.eq.s32.totalorder %s19, 0
      %p96 = por %p94, %p95
      %p97 = scmp.ne.s32.totalorder %s85, %s86
      %p98 = scmp.eq.s32.totalorder %s20, 1
      %p99 = por %p97, %p98
      %p101 = scmp.ne.s32.totalorder %s86, %s100
      %p102 = scmp.eq.s32.totalorder %s20, 0
      %p103 = por %p101, %p102
      %s105 = sadd.s32 %s104, 1
      %p108 = scmp.eq.s32.totalorder %s14, 1
      %p109 = scmp.ne.s32.totalorder %s104, %s106
      %p110 = scmp.eq.s32.totalorder %s14, 0
      %p111 = por %p109, %p110
      %p112 = scmp.ne.s32.totalorder %s104, %s106
      %p113 = scmp.eq.s32.totalorder %s19, 1
      %p114 = por %p112, %p113
      %p115 = scmp.ne.s32.totalorder %s106, %s107
      %p116 = scmp.eq.s32.totalorder %s19, 0
      %p117 = por %p115, %p116
      %p118 = scmp.ne.s32.totalorder %s106, %s107
      %p119 = scmp.eq.s32.totalorder %s20, 1
      %p120 = por %p118, %p119
      %p122 = scmp.ne.s32.totalorder %s107, %s121
      %p123 = scmp.eq.s32.totalorder %s20, 0
      %p124 = por %p122, %p123
      %s126 = sadd.s32 %s125, 1
      %p129 = scmp.eq.s32.totalorder %s14, 1
      %p130 = scmp.ne.s32.totalorder %s125, %s127
      %p131 = scmp.eq.s32.totalorder %s14, 0
      %p132 = por %p130, %p131
      %p133 = scmp.ne.s32.totalorder %s125, %s127
      %p134 = scmp.eq.s32.totalorder %s19, 1
      %p135 = por %p133, %p134
      %p136 = scmp.ne.s32.totalorder %s127, %s128
      %p137 = scmp.eq.s32.totalorder %s19, 0
      %p138 = por %p136, %p137
      %p139 = scmp.ne.s32.totalorder %s127, %s128
      %p140 = scmp.eq.s32.totalorder %s20, 1
      %p141 = por %p139, %p140
      %p143 = scmp.ne.s32.totalorder %s128, %s142
      %p144 = scmp.eq.s32.totalorder %s20, 0
      %p145 = por %p143, %p144
      %s146 = ssub.s32 %s21, %s33
      %p147 = scmp.eq.s32.totalorder %s146, 0
      %s149 = sadd.s32 %s148, 1
      %s150 = scalar_select %p147, %s148, %s149
      %p153 = pneg %p147
      %p154 = scmp.eq.s32.totalorder %s14, 1
      %p155 = por %p153, %p154
      %p156 = scmp.ne.s32.totalorder %s148, %s151
      %p157 = scmp.eq.s32.totalorder %s14, 0
      %p158 = por %p156, %p157
      %p159 = scmp.ne.s32.totalorder %s148, %s151
      %p160 = scmp.eq.s32.totalorder %s19, 1
      %p161 = por %p159, %p160
      %p162 = scmp.ne.s32.totalorder %s151, %s152
      %p163 = scmp.eq.s32.totalorder %s19, 0
      %p164 = por %p162, %p163
      %p165 = scmp.ne.s32.totalorder %s151, %s152
      %p166 = scmp.eq.s32.totalorder %s20, 1
      %p167 = por %p165, %p166
      %p169 = scmp.ne.s32.totalorder %s152, %s168
      %p170 = scmp.eq.s32.totalorder %s20, 0
      %p171 = por %p169, %p170
      %p172 = scmp.le.s32.totalorder 1, %s14
      %p173 = scmp.lt.s32.totalorder %s14, 3
      %p174 = pnand %p172, %p173
      %p175 = pneg %p174
      // Predicated region
      $region9: #{tpu_custom_call.1} parent=5 // pred_check
        _
      $region10: #{tpu_custom_call.1} parent=5 // pred_check_branch
        %177 = sbr.rel (%p174) target = $region12
      $region11: #{tpu_custom_call.1} parent=5 // pred_region
        %s178 = ssub.s32 %s14, 1
        // Predicated region
        $region13: #{tpu_custom_call.1} parent=11 // pred_check
          %p179 = pneg %p75
        $region14: #{tpu_custom_call.1} parent=11 // pred_check_branch
          %181 = sbr.rel (%p179) target = $region16
        $region15: #{tpu_custom_call.1} parent=11 // pred_region
          _
        $region16: #{tpu_custom_call.1} parent=11 // pred_fallthru
          _
        // Predicated region
        $region17: #{tpu_custom_call.1} parent=11 // pred_check
          %p182 = pneg %p96
        $region18: #{tpu_custom_call.1} parent=11 // pred_check_branch
          %184 = sbr.rel (%p182) target = $region20
        $region19: #{tpu_custom_call.1} parent=11 // pred_region
          _
        $region20: #{tpu_custom_call.1} parent=11 // pred_fallthru
          _
        // Predicated region
        $region21: #{tpu_custom_call.1} parent=11 // pred_check
          %p185 = pneg %p117
        $region22: #{tpu_custom_call.1} parent=11 // pred_check_branch
          %187 = sbr.rel (%p185) target = $region24
        $region23: #{tpu_custom_call.1} parent=11 // pred_region
          _
        $region24: #{tpu_custom_call.1} parent=11 // pred_fallthru
          _
        // Predicated region
        $region25: #{tpu_custom_call.1} parent=11 // pred_check
          %p188 = pneg %p138
        $region26: #{tpu_custom_call.1} parent=11 // pred_check_branch
          %190 = sbr.rel (%p188) target = $region28
        $region27: #{tpu_custom_call.1} parent=11 // pred_region
          _
        $region28: #{tpu_custom_call.1} parent=11 // pred_fallthru
          _
      $region12: #{tpu_custom_call.1} parent=5 // pred_fallthru
        _
      %p191 = scmp.lt.s32.totalorder %s14, 2
      // Predicated region
      $region29: #{tpu_custom_call.1} parent=5 // pred_check
        %p192 = pneg %p191
      $region30: #{tpu_custom_call.1} parent=5 // pred_check_branch
        %194 = sbr.rel (%p192) target = $region32
      $region31: #{tpu_custom_call.1} parent=5 // pred_region
        // Predicated region
        $region33: #{tpu_custom_call.1} parent=31 // pred_check
          %p195 = pneg %p48
        $region34: #{tpu_custom_call.1} parent=31 // pred_check_branch
          %197 = sbr.rel (%p195) target = $region36
        $region35: #{tpu_custom_call.1} parent=31 // pred_region
          %s198 = smul.u32 2, %s22
          %p199 = scmp.lt.s32.totalorder %s21, 1
          %s200 = scalar_select %p199, %s21, 1
          %p201 = scmp.lt.s32.totalorder %s198, 1
          %s202 = scalar_select %p201, %s198, 1
          %s203 = smul.addr %s200, 2
          %s204 = sadd.s32 %s202, %s203
          %s205 = scalar_lea.vmem %s0, %s204
          %s206 = smul.u32 2, %s22
        $region36: #{tpu_custom_call.1} parent=31 // pred_fallthru
          _
      $region32: #{tpu_custom_call.1} parent=5 // pred_fallthru
        _
      %p207 = scmp.le.s32.totalorder 1, %s14
      %p208 = scmp.lt.s32.totalorder %s14, 3
      %p209 = pnand %p207, %p208
      %p210 = pneg %p209
      // Predicated region
      $region37: #{tpu_custom_call.1} parent=5 // pred_check
        _
      $region38: #{tpu_custom_call.1} parent=5 // pred_check_branch
        %212 = sbr.rel (%p209) target = $region40
      $region39: #{tpu_custom_call.1} parent=5 // pred_region
        %s213 = ssub.s32 %s14, 1
        %s214 = smul.u32 2, %s24
        %p215 = scmp.lt.s32.totalorder %s23, 1
        %s216 = scalar_select %p215, %s23, 1
        %p217 = scmp.lt.s32.totalorder %s214, 1
        %s218 = scalar_select %p217, %s214, 1
        %s219 = smul.addr %s216, 2
        %s220 = sadd.s32 %s218, %s219
        %s221 = scalar_lea.vmem %s0, %s220
        %p222 = pneg %p54
        %p223 = pneg %p51
        %p224 = pneg %p75
        %p225 = pneg %p72
        %p226 = pneg %p96
        %p227 = pneg %p93
        %p228 = pneg %p117
        %p229 = pneg %p114
        %p230 = pneg %p138
        %p231 = pneg %p135
        %p232 = pneg %p164
        %p233 = pneg %p161
        %s234 = sand.u32 %s151, 1
        %s235 = scalar_lea.sflag [#allocation4], %s234
        %s236 = sand.u32 %s151, 1
        %s237 = scalar_lea.vmem [#allocation3], %s236
        %s238 = smul.u32 2, %s24
        %p239 = scmp.lt.s32.totalorder %s23, 1
        %s240 = scalar_select %p239, %s23, 1
        %p241 = scmp.lt.s32.totalorder %s238, 1
        %s242 = scalar_select %p241, %s238, 1
        %s243 = smul.addr %s240, 2
        %s244 = sadd.s32 %s242, %s243
        %s245 = scalar_lea.vmem %s0, %s244
        %s246 = smul.u32 2, %s24
        %p247 = scmp.eq.s32.totalorder %s24, 0
        // Predicated region
        $region41: #{tpu_custom_call.1} parent=39 // pred_check
          %p248 = pneg %p247
        $region42: #{tpu_custom_call.1} parent=39 // pred_check_branch
          %250 = sbr.rel (%p248) target = $region44
        $region43: #{tpu_custom_call.1} parent=39 // pred_region
          %251 = vst [vmem:[#allocation2] sm:$0xff] 0.0
          %252 = vst [vmem:[#allocation2 + $0x8] sm:$0xff] 0.0
          %253 = vst [vmem:[#allocation2 + $0x10] sm:$0xff] 0.0
          %254 = vst [vmem:[#allocation2 + $0x18] sm:$0xff] 0.0
        $region44: #{tpu_custom_call.1} parent=39 // pred_fallthru
          _
        %v255 = vld [vmem:[%s1] sm:$0xff]
        %v256 = vld [vmem:[%s1 + $0x8] sm:$0xff]
        %v257 = vld [vmem:[%s1 + $0x10] sm:$0xff]
        %v258 = vld [vmem:[%s1 + $0x18] sm:$0xff]
        %v259 = vld [vmem:[%s2] sm:$0xff]
        %v260 = vld [vmem:[%s2 + $0x8] sm:$0xff]
        %v261 = vld [vmem:[%s2 + $0x10] sm:$0xff]
        %v262 = vld [vmem:[%s2 + $0x18] sm:$0xff]
        %264 = vset.pattern.permute.xlu0 0
        %265 = vperm.xlu0 %264, %v259
        %v266 = vpop.permute.xlu0 %265
        %269 = vset.pattern.permute.xlu0 0
        %270 = vperm.xlu0 %269, %v260
        %v271 = vpop.permute.xlu0 %270
        %274 = vset.pattern.permute.xlu0 0
        %275 = vperm.xlu0 %274, %v261
        %v276 = vpop.permute.xlu0 %275
        %279 = vset.pattern.permute.xlu0 0
        %280 = vperm.xlu0 %279, %v262
        %v281 = vpop.permute.xlu0 %280
        %284 = vset.pattern.permute.xlu0 0
        %285 = vperm.xlu0 %284, %v255
        %v286 = vpop.permute.xlu0 %285
        %289 = vset.pattern.permute.xlu0 0
        %290 = vperm.xlu0 %289, %v256
        %v291 = vpop.permute.xlu0 %290
        %294 = vset.pattern.permute.xlu0 0
        %295 = vperm.xlu0 %294, %v257
        %v296 = vpop.permute.xlu0 %295
        %299 = vset.pattern.permute.xlu0 0
        %300 = vperm.xlu0 %299, %v258
        %v301 = vpop.permute.xlu0 %300
        %v303 = vld [vmem:[%s245] sm:$0x3]
        %v305 = vlaneseq
        %v306 = vshrl.u32 %v305, 7
        %v307 = vsub.s32 0, %v306
        %v308 = vrot.slane %v303, %v307
        %v309 = vlaneseq
        %v310 = vshrl.u32 %v309, 7
        %v311 = vsub.s32 1, %v310
        %v312 = vrot.slane %v303, %v311
        %v315 = vmul.f32 %v286, %v308
        %v316 = vmul.f32 %v286, %v312
        %v317 = vmul.f32 %v291, %v308
        %v318 = vmul.f32 %v291, %v312
        %v319 = vmul.f32 %v296, %v308
        %v320 = vmul.f32 %v296, %v312
        %v321 = vmul.f32 %v301, %v308
        %v322 = vmul.f32 %v301, %v312
        %v323 = vadd.f32 %v315, %v266
        %v324 = vadd.f32 %v316, %v266
        %v325 = vadd.f32 %v317, %v271
        %v326 = vadd.f32 %v318, %v271
        %v327 = vadd.f32 %v319, %v276
        %v328 = vadd.f32 %v320, %v276
        %v329 = vadd.f32 %v321, %v281
        %v330 = vadd.f32 %v322, %v281
        %v331 = vmax.f32 %v323, 0.0
        %v332 = vmax.f32 %v324, 0.0
        %v333 = vmax.f32 %v325, 0.0
        %v334 = vmax.f32 %v326, 0.0
        %v335 = vmax.f32 %v327, 0.0
        %v336 = vmax.f32 %v328, 0.0
        %v337 = vmax.f32 %v329, 0.0
        %v338 = vmax.f32 %v330, 0.0
        %v339 = vadd.f32 %v331, %v332
        %v340 = vadd.f32 %v333, %v334
        %v341 = vadd.f32 %v335, %v336
        %v342 = vadd.f32 %v337, %v338
        %v343 = vadd.f32 %v339, 0.0
        %v344 = vadd.f32 %v340, 0.0
        %v345 = vadd.f32 %v341, 0.0
        %v346 = vadd.f32 %v342, 0.0
        %v347 = vld [vmem:[#allocation2] sm:$0xff]
        %v348 = vld [vmem:[#allocation2 + $0x8] sm:$0xff]
        %v349 = vld [vmem:[#allocation2 + $0x10] sm:$0xff]
        %v350 = vld [vmem:[#allocation2 + $0x18] sm:$0xff]
        %v351 = vadd.f32 %v347, %v343
        %v352 = vadd.f32 %v348, %v344
        %v353 = vadd.f32 %v349, %v345
        %v354 = vadd.f32 %v350, %v346
        %355 = vst [vmem:[#allocation2] sm:$0xff] %v351
        %356 = vst [vmem:[#allocation2 + $0x8] sm:$0xff] %v352
        %357 = vst [vmem:[#allocation2 + $0x10] sm:$0xff] %v353
        %358 = vst [vmem:[#allocation2 + $0x18] sm:$0xff] %v354
        // Predicated region
        $region45: #{tpu_custom_call.1} parent=39 // pred_check
          %p359 = pneg %p247
        $region46: #{tpu_custom_call.1} parent=39 // pred_check_branch
          %361 = sbr.rel (%p359) target = $region48
        $region47: #{tpu_custom_call.1} parent=39 // pred_region
          %v362 = vld [vmem:[#allocation2] sm:$0xff]
          %v363 = vld [vmem:[#allocation2 + $0x8] sm:$0xff]
          %v364 = vld [vmem:[#allocation2 + $0x10] sm:$0xff]
          %v365 = vld [vmem:[#allocation2 + $0x18] sm:$0xff]
          %366 = vadd.xlane.f32.xlu0 %v362
          %v367 = vpop.xlane.xlu0 %366
          %368 = vadd.xlane.f32.xlu0 %v363
          %v369 = vpop.xlane.xlu0 %368
          %370 = vadd.xlane.f32.xlu0 %v364
          %v371 = vpop.xlane.xlu0 %370
          %372 = vadd.xlane.f32.xlu0 %v365
          %v373 = vpop.xlane.xlu0 %372
          %v374 = vmul.f32 %v367, 0.00390625
          %v375 = vmul.f32 %v369, 0.00390625
          %v376 = vmul.f32 %v371, 0.00390625
          %v377 = vmul.f32 %v373, 0.00390625
          %v378 = vld [vmem:[%s3] sm:$0xff]
          %v379 = vld [vmem:[%s3 + $0x8] sm:$0xff]
          %v380 = vld [vmem:[%s3 + $0x10] sm:$0xff]
          %v381 = vld [vmem:[%s3 + $0x18] sm:$0xff]
          %v382 = vmul.f32 %v378, %v374
          %v383 = vmul.f32 %v379, %v375
          %v384 = vmul.f32 %v380, %v376
          %v385 = vmul.f32 %v381, %v377
          %vm386 = vcmask 48128
          %v387 = vsel %vm386, %v382, 0.0
          %v388 = vsel %vm386, %v383, 0.0
          %v389 = vadd.f32 %v387, %v388
          %v390 = vsel %vm386, %v384, 0.0
          %v391 = vadd.f32 %v389, %v390
          %v392 = vsel %vm386, %v385, 0.0
          %v393 = vadd.f32 %v391, %v392
          %v394 = vrot.slane %v393, 4
          %v395 = vadd.f32 %v393, %v394
          %v396 = vrot.slane %v395, 2
          %v397 = vadd.f32 %v395, %v396
          %v398 = vrot.slane %v397, 1
          %v399 = vadd.f32 %v397, %v398
          %v400 = vld [vmem:[%s4] sm:$0x1]
          %v401 = vadd.f32 %v399, %v400
          %vm402 = vcmask 40960
          %403 = vst.msk [vmem:[%s237] sm:$0x1] %vm402, %v401
        $region48: #{tpu_custom_call.1} parent=39 // pred_fallthru
          _
        %s404 = sand.u32 %s151, 1
        %s405 = scalar_lea.sflag [#allocation4], %s404
        %s406 = sand.u32 %s151, 1
        %s407 = scalar_lea.vmem [#allocation3], %s406
        // Predicated region
        $region49: #{tpu_custom_call.1} parent=39 // pred_check
          %p408 = pneg %p161
        $region50: #{tpu_custom_call.1} parent=39 // pred_check_branch
          %410 = sbr.rel (%p408) target = $region52
        $region51: #{tpu_custom_call.1} parent=39 // pred_region
          %s412 = ssub.s32 16, 16
          %413 = vsyncadd %s405, %s412
          %s414 = smul.addr %s23, 16
          %s415 = scalar_lea.hbm %s5, %s414
          %s417 = sshll.u32 %s407, 4
          %s418 = int_to_ptr.vmem [resolvable:$true] %s417
          %420 = dma.vmem_to_hbm [thread:$0]  %s418, 16, %s415, %s405
        $region52: #{tpu_custom_call.1} parent=39 // pred_fallthru
          _
      $region40: #{tpu_custom_call.1} parent=5 // pred_fallthru
        _
      %p421 = scmp.le.s32.totalorder 2, %s14
      // Predicated region
      $region53: #{tpu_custom_call.1} parent=5 // pred_check
        %p422 = pneg %p421
      $region54: #{tpu_custom_call.1} parent=5 // pred_check_branch
        %424 = sbr.rel (%p422) target = $region56
      $region55: #{tpu_custom_call.1} parent=5 // pred_region
        %s425 = ssub.s32 %s14, 2
        // Predicated region
        $region57: #{tpu_custom_call.1} parent=55 // pred_check
          %p426 = pneg %p167
        $region58: #{tpu_custom_call.1} parent=55 // pred_check_branch
          %428 = sbr.rel (%p426) target = $region60
        $region59: #{tpu_custom_call.1} parent=55 // pred_region
          %s429 = sand.u32 %s152, 1
          %s430 = scalar_lea.sflag [#allocation4], %s429
          %s431 = sand.u32 %s152, 1
          %s432 = scalar_lea.vmem [#allocation3], %s431
          %433 = dma.done %s430, 16
        $region60: #{tpu_custom_call.1} parent=55 // pred_fallthru
          _
      $region56: #{tpu_custom_call.1} parent=5 // pred_fallthru
        _
    $region6: #{tpu_custom_call.1} parent=1 // loop_footer
      %s18 = sadd.s32 1, %s14
    $region7: #{tpu_custom_call.1} parent=1 // loop_footer_branch
      %13 = sbr.rel target = $region3
    $region8: #{tpu_custom_call.1} parent=1 // loop_exit
      _
    %434 = vsyncpa [#allocation4], 1
    %s435 = scalar_lea.sflag [#allocation4], 1
    %436 = vsyncpa %s435, 1

</llo_original>
